<compile_context>
chip_gen: v5e
topology: v5e:2x2
jax: 0.10.0
libtpu: 0.0.40
codegen_flags: <defaults>
</compile_context>

<pallas_src>
import jax
import jax.numpy as jnp
from jax.experimental import pallas as pl
from jax.experimental.pallas import tpu as pltpu

LANE = 128  # lane-dense width for the final output store only


def fused_gnn_kernel(a_ref, invdeg_ref, x_ref, wl1_ref, wr1_ref, b1_ref,
                     wl2_ref, wr2_ref, b2_ref, o_ref):
    """Two fused SAGEConv+ReLU layers, everything resident in VMEM.

    a_ref     : (N, N)    bf16  raw count adjacency (A[dst, src] = #edges)
    invdeg_ref: (N, 1)    f32   1 / max(in_degree, 1)
    x_ref     : (N, 16)   bf16  node features (natural width)
    wl1/wr1   : (16, 32)  bf16  layer-1 aggregate / root projections
    b1        : (1, 32)   f32   lin_l bias
    wl2/wr2   : (32, 128) bf16  layer-2 projections, output dim zero-padded
    b2        : (1, 128)  f32   zero-padded bias
    o_ref     : (N, 128)  f32   padded output (sliced to output_dim outside)
    """
    x = x_ref[...]
    inv_deg = invdeg_ref[...]

    # ---- layer 1: agg = D^-1 (A @ x); h = relu(agg @ Wl1 + x @ Wr1 + b1) ---
    agg1 = inv_deg * jnp.dot(a_ref[...], x, preferred_element_type=jnp.float32)
    h = jnp.maximum(
        jnp.dot(agg1.astype(jnp.bfloat16), wl1_ref[...],
                preferred_element_type=jnp.float32)
        + jnp.dot(x, wr1_ref[...], preferred_element_type=jnp.float32)
        + b1_ref[...],
        0.0,
    )
    h_bf = h.astype(jnp.bfloat16)          # (N, 32) -- lives in vregs

    # ---- layer 2: agg = D^-1 (A @ h); out = relu(agg @ Wl2 + h @ Wr2 + b2) -
    agg2 = inv_deg * jnp.dot(a_ref[...], h_bf,
                             preferred_element_type=jnp.float32)
    o_ref[...] = jnp.maximum(
        jnp.dot(agg2.astype(jnp.bfloat16), wl2_ref[...],
                preferred_element_type=jnp.float32)
        + jnp.dot(h_bf, wr2_ref[...], preferred_element_type=jnp.float32)
        + b2_ref[...],
        0.0,
    )


def _pad_cols(a, cols):
    return jnp.pad(a, ((0, 0), (0, cols - a.shape[1])))


def gnn_forward(x, a_counts, inv_deg, params):
    """GNN.forward: two SAGEConv layers, each followed by ReLU (fully fused)."""
    n, _ = x.shape
    d_out = params["wl2"].shape[1]
    assert n % 8 == 0 and d_out <= LANE

    bf = jnp.bfloat16
    x_b = x.astype(bf)
    a_b = a_counts.astype(bf)            # small integer counts: exact in bf16
    wl1 = params["wl1"].astype(bf)       # (16, 32) compact, no K padding
    wr1 = params["wr1"].astype(bf)
    b1 = params["b1"]                    # f32, elementwise work stays f32
    wl2 = _pad_cols(params["wl2"], LANE).astype(bf)   # (32, 128)
    wr2 = _pad_cols(params["wr2"], LANE).astype(bf)
    b2 = _pad_cols(params["b2"], LANE)

    vmem = pl.BlockSpec(memory_space=pltpu.MemorySpace.VMEM)
    out_pad = pl.pallas_call(
        fused_gnn_kernel,
        out_shape=jax.ShapeDtypeStruct((n, LANE), jnp.float32),
        in_specs=[vmem] * 9,
        out_specs=vmem,
    )(a_b, inv_deg, x_b, wl1, wr1, b1, wl2, wr2, b2)

    return out_pad[:, :d_out]


def build_adjacency(edge_index, num_nodes):
    """Raw count adjacency + inverse in-degree (normalization done in-kernel).

    A[dst, src] = #edges src->dst ; inv_deg[i] = 1 / max(in_deg(i), 1).
    Matches PyG scatter-mean over edge messages (nodes with no in-edges -> 0).
    Build once and cache if the forward runs repeatedly.
    """
    src = edge_index[0]
    dst = edge_index[1]
    a = jnp.zeros((num_nodes, num_nodes), jnp.float32).at[dst, src].add(1.0)
    deg = jnp.sum(a, axis=1, keepdims=True)
    inv_deg = 1.0 / jnp.maximum(deg, 1.0)
    return a, inv_deg


def init_params(key, input_dim, hidden_dim, output_dim):
    ks = jax.random.split(key, 6)
    scale1 = 1.0 / jnp.sqrt(input_dim)
    scale2 = 1.0 / jnp.sqrt(hidden_dim)
    return {
        # layer 1: lin_l (with bias) on the aggregate, lin_r (no bias) on root
        "wl1": scale1 * jax.random.normal(ks[0], (input_dim, hidden_dim), jnp.float32),
        "wr1": scale1 * jax.random.normal(ks[1], (input_dim, hidden_dim), jnp.float32),
        "b1": scale1 * jax.random.normal(ks[2], (1, hidden_dim), jnp.float32),
        # layer 2
        "wl2": scale2 * jax.random.normal(ks[3], (hidden_dim, output_dim), jnp.float32),
        "wr2": scale2 * jax.random.normal(ks[4], (hidden_dim, output_dim), jnp.float32),
        "b2": scale2 * jax.random.normal(ks[5], (1, output_dim), jnp.float32),
    }


if __name__ == "__main__":
    key = jax.random.PRNGKey(0)
    k_x, k_e, k_p = jax.random.split(key, 3)

    num_nodes = 128
    num_edges = 256
    input_dim, hidden_dim, output_dim = 16, 32, 8

    # data.x : [num_nodes, input_dim]
    x = jax.random.normal(k_x, (num_nodes, input_dim), jnp.float32)
    # data.edge_index : [2, num_edges]  (row 0 = source, row 1 = target)
    edge_index = jax.random.randint(k_e, (2, num_edges), 0, num_nodes, jnp.int32)

    a_counts, inv_deg = build_adjacency(edge_index, num_nodes)
    params = init_params(k_p, input_dim, hidden_dim, output_dim)

    fwd = jax.jit(gnn_forward)
    out = fwd(x, a_counts, inv_deg, params)
    jax.block_until_ready(out)

    # reference check in plain JAX (f32, unpadded math); kernel uses bf16
    # operands with f32 accumulation, so tolerance is loosened accordingly.
    a_norm = a_counts * inv_deg
    agg1 = a_norm @ x
    h_ref = jnp.maximum(agg1 @ params["wl1"] + x @ params["wr1"] + params["b1"], 0.0)
    agg2 = a_norm @ h_ref
    out_ref = jnp.maximum(
        agg2 @ params["wl2"] + h_ref @ params["wr2"] + params["b2"], 0.0
    )
    assert out.shape == (num_nodes, output_dim)
    assert jnp.allclose(out, out_ref, atol=5e-2, rtol=5e-2)

    print("KERNEL_OK")
</pallas_src>

<mosaic_0001>
module attributes {stable_mosaic.version = 11 : i64} {
  func.func @fused_gnn_kernel(%arg0: memref<128x128xbf16, #tpu.memory_space<vmem>>, %arg1: memref<128x1xf32, #tpu.memory_space<vmem>>, %arg2: memref<128x16xbf16, #tpu.memory_space<vmem>>, %arg3: memref<16x32xbf16, #tpu.memory_space<vmem>>, %arg4: memref<16x32xbf16, #tpu.memory_space<vmem>>, %arg5: memref<1x32xf32, #tpu.memory_space<vmem>>, %arg6: memref<32x128xbf16, #tpu.memory_space<vmem>>, %arg7: memref<32x128xbf16, #tpu.memory_space<vmem>>, %arg8: memref<1x128xf32, #tpu.memory_space<vmem>>, %arg9: memref<128x128xf32, #tpu.memory_space<vmem>>) attributes {dimension_semantics = [], scalar_prefetch = 0 : i64, scratch_operands = 0 : i64, tpu.core_type = #tpu.core_type<tc>} {
    %c0 = arith.constant 0 : index
    %c0_0 = arith.constant 0 : index
    %0 = vector.load %arg2[%c0, %c0_0] : memref<128x16xbf16, #tpu.memory_space<vmem>>, vector<128x16xbf16>
    %c0_1 = arith.constant 0 : index
    %c0_2 = arith.constant 0 : index
    %1 = vector.load %arg1[%c0_1, %c0_2] : memref<128x1xf32, #tpu.memory_space<vmem>>, vector<128x1xf32>
    %c0_3 = arith.constant 0 : index
    %c0_4 = arith.constant 0 : index
    %2 = vector.load %arg0[%c0_3, %c0_4] : memref<128x128xbf16, #tpu.memory_space<vmem>>, vector<128x128xbf16>
    %cst = arith.constant dense<0.000000e+00> : vector<128x16xf32>
    %3 = tpu.matmul %2, %0, %cst {dimension_numbers = #tpu.dot_dimension_numbers<[1], [0], [0], [1], [0, 0, 1, 1], [], []>} : vector<128x128xbf16>, vector<128x16xbf16>, vector<128x16xf32> -> vector<128x16xf32>
    %4 = vector.broadcast %1 : vector<128x1xf32> to vector<128x16xf32>
    %5 = arith.mulf %4, %3 : vector<128x16xf32>
    %6 = arith.truncf %5 : vector<128x16xf32> to vector<128x16xbf16>
    %c0_5 = arith.constant 0 : index
    %c0_6 = arith.constant 0 : index
    %7 = vector.load %arg3[%c0_5, %c0_6] : memref<16x32xbf16, #tpu.memory_space<vmem>>, vector<16x32xbf16>
    %cst_7 = arith.constant dense<0.000000e+00> : vector<128x32xf32>
    %8 = tpu.matmul %6, %7, %cst_7 {dimension_numbers = #tpu.dot_dimension_numbers<[1], [0], [0], [1], [0, 0, 1, 1], [], []>} : vector<128x16xbf16>, vector<16x32xbf16>, vector<128x32xf32> -> vector<128x32xf32>
    %c0_8 = arith.constant 0 : index
    %c0_9 = arith.constant 0 : index
    %9 = vector.load %arg4[%c0_8, %c0_9] : memref<16x32xbf16, #tpu.memory_space<vmem>>, vector<16x32xbf16>
    %cst_10 = arith.constant dense<0.000000e+00> : vector<128x32xf32>
    %10 = tpu.matmul %0, %9, %cst_10 {dimension_numbers = #tpu.dot_dimension_numbers<[1], [0], [0], [1], [0, 0, 1, 1], [], []>} : vector<128x16xbf16>, vector<16x32xbf16>, vector<128x32xf32> -> vector<128x32xf32>
    %11 = arith.addf %8, %10 : vector<128x32xf32>
    %c0_11 = arith.constant 0 : index
    %c0_12 = arith.constant 0 : index
    %12 = vector.load %arg5[%c0_11, %c0_12] : memref<1x32xf32, #tpu.memory_space<vmem>>, vector<1x32xf32>
    %13 = vector.broadcast %12 : vector<1x32xf32> to vector<128x32xf32>
    %14 = arith.addf %11, %13 : vector<128x32xf32>
    %cst_13 = arith.constant 0.000000e+00 : f32
    %15 = vector.broadcast %cst_13 : f32 to vector<128x32xf32>
    %16 = arith.maximumf %14, %15 : vector<128x32xf32>
    %17 = arith.truncf %16 : vector<128x32xf32> to vector<128x32xbf16>
    %c0_14 = arith.constant 0 : index
    %c0_15 = arith.constant 0 : index
    %18 = vector.load %arg0[%c0_14, %c0_15] : memref<128x128xbf16, #tpu.memory_space<vmem>>, vector<128x128xbf16>
    %cst_16 = arith.constant dense<0.000000e+00> : vector<128x32xf32>
    %19 = tpu.matmul %18, %17, %cst_16 {dimension_numbers = #tpu.dot_dimension_numbers<[1], [0], [0], [1], [0, 0, 1, 1], [], []>} : vector<128x128xbf16>, vector<128x32xbf16>, vector<128x32xf32> -> vector<128x32xf32>
    %20 = vector.broadcast %1 : vector<128x1xf32> to vector<128x32xf32>
    %21 = arith.mulf %20, %19 : vector<128x32xf32>
    %22 = arith.truncf %21 : vector<128x32xf32> to vector<128x32xbf16>
    %c0_17 = arith.constant 0 : index
    %c0_18 = arith.constant 0 : index
    %23 = vector.load %arg6[%c0_17, %c0_18] : memref<32x128xbf16, #tpu.memory_space<vmem>>, vector<32x128xbf16>
    %cst_19 = arith.constant dense<0.000000e+00> : vector<128x128xf32>
    %24 = tpu.matmul %22, %23, %cst_19 {dimension_numbers = #tpu.dot_dimension_numbers<[1], [0], [0], [1], [0, 0, 1, 1], [], []>} : vector<128x32xbf16>, vector<32x128xbf16>, vector<128x128xf32> -> vector<128x128xf32>
    %c0_20 = arith.constant 0 : index
    %c0_21 = arith.constant 0 : index
    %25 = vector.load %arg7[%c0_20, %c0_21] : memref<32x128xbf16, #tpu.memory_space<vmem>>, vector<32x128xbf16>
    %cst_22 = arith.constant dense<0.000000e+00> : vector<128x128xf32>
    %26 = tpu.matmul %17, %25, %cst_22 {dimension_numbers = #tpu.dot_dimension_numbers<[1], [0], [0], [1], [0, 0, 1, 1], [], []>} : vector<128x32xbf16>, vector<32x128xbf16>, vector<128x128xf32> -> vector<128x128xf32>
    %27 = arith.addf %24, %26 : vector<128x128xf32>
    %c0_23 = arith.constant 0 : index
    %c0_24 = arith.constant 0 : index
    %28 = vector.load %arg8[%c0_23, %c0_24] : memref<1x128xf32, #tpu.memory_space<vmem>>, vector<1x128xf32>
    %29 = vector.broadcast %28 : vector<1x128xf32> to vector<128x128xf32>
    %30 = arith.addf %27, %29 : vector<128x128xf32>
    %cst_25 = arith.constant 0.000000e+00 : f32
    %31 = vector.broadcast %cst_25 : f32 to vector<128x128xf32>
    %32 = arith.maximumf %30, %31 : vector<128x128xf32>
    %c0_26 = arith.constant 0 : index
    %c0_27 = arith.constant 0 : index
    %33 = vector.load %arg9[%c0_26, %c0_27] : memref<128x128xf32, #tpu.memory_space<vmem>>, vector<128x128xf32>
    tpu.vector_store %arg9[%c0_26, %c0_27], %32 {strides = array<i32>} : memref<128x128xf32, #tpu.memory_space<vmem>>, vector<128x128xf32>,
    return
  }
}

</mosaic_0001>

<llo_original>
// kernel: gnn_forward.1
$region0: #{gnn_forward.1}
  #allocation0 [shape = 'u32[]', space=smem, size = 0x4, offset = 0x4, fixed_abs, tag = 'smem constant byte address 0x4 - core index']
  #allocation1 [shape = 'u32[72,128]{1,0:T(1,128)}', space=vmem, size = 0x9000, scoped, tag = 'internal scratch']
  %s0 = inlined_call_operand.vmem [shape: bf16[128,128], index: 0, kind: input, shape index: {}]
  %s1 = inlined_call_operand.vmem [shape: f32[128,1], index: 1, kind: input, shape index: {}]
  %s2 = inlined_call_operand.vmem [shape: bf16[128,16], index: 2, kind: input, shape index: {}]
  %s3 = inlined_call_operand.vmem [shape: bf16[16,32], index: 3, kind: input, shape index: {}]
  %s4 = inlined_call_operand.vmem [shape: bf16[16,32], index: 4, kind: input, shape index: {}]
  %s5 = inlined_call_operand.vmem [shape: f32[1,32], index: 5, kind: input, shape index: {}]
  %s6 = inlined_call_operand.vmem [shape: bf16[32,128], index: 6, kind: input, shape index: {}]
  %s7 = inlined_call_operand.vmem [shape: bf16[32,128], index: 7, kind: input, shape index: {}]
  %s8 = inlined_call_operand.vmem [shape: f32[1,128], index: 8, kind: input, shape index: {}]
  %s9 = inlined_call_operand.vmem [shape: f32[128,128], index: 9, kind: output, shape index: {}]
  %s10 = sld [smem:[#allocation0]]
  $region46: #{gnn_forward.1} parent=0
    _
  %s12 = ssub.s32 1, %s10
  %s13 = scalar_select 0, %s12, %s10
  // Predicated region
  $region2: #{gnn_forward.1} parent=0 // pred_check
    _
  $region3: #{gnn_forward.1} parent=0 // pred_check_branch
    %15 = sbr.rel (0) target = $region5
  $region4: #{gnn_forward.1} parent=0 // pred_region
    _
  $region5: #{gnn_forward.1} parent=0 // pred_fallthru
    _
  // Predicated region
  $region6: #{gnn_forward.1} parent=0 // pred_check
    _
  $region7: #{gnn_forward.1} parent=0 // pred_check_branch
    %17 = sbr.rel (0) target = $region9
  $region8: #{gnn_forward.1} parent=0 // pred_region
    _
  $region9: #{gnn_forward.1} parent=0 // pred_fallthru
    _
  // Predicated region
  $region10: #{gnn_forward.1} parent=0 // pred_check
    _
  $region11: #{gnn_forward.1} parent=0 // pred_check_branch
    %19 = sbr.rel (0) target = $region13
  $region12: #{gnn_forward.1} parent=0 // pred_region
    _
  $region13: #{gnn_forward.1} parent=0 // pred_fallthru
    _
  // Predicated region
  $region14: #{gnn_forward.1} parent=0 // pred_check
    _
  $region15: #{gnn_forward.1} parent=0 // pred_check_branch
    %21 = sbr.rel (0) target = $region17
  $region16: #{gnn_forward.1} parent=0 // pred_region
    _
  $region17: #{gnn_forward.1} parent=0 // pred_fallthru
    _
  // Predicated region
  $region18: #{gnn_forward.1} parent=0 // pred_check
    _
  $region19: #{gnn_forward.1} parent=0 // pred_check_branch
    %23 = sbr.rel (0) target = $region21
  $region20: #{gnn_forward.1} parent=0 // pred_region
    _
  $region21: #{gnn_forward.1} parent=0 // pred_fallthru
    _
  // Predicated region
  $region22: #{gnn_forward.1} parent=0 // pred_check
    _
  $region23: #{gnn_forward.1} parent=0 // pred_check_branch
    %25 = sbr.rel (0) target = $region25
  $region24: #{gnn_forward.1} parent=0 // pred_region
    _
  $region25: #{gnn_forward.1} parent=0 // pred_fallthru
    _
  // Predicated region
  $region26: #{gnn_forward.1} parent=0 // pred_check
    _
  $region27: #{gnn_forward.1} parent=0 // pred_check_branch
    %27 = sbr.rel (0) target = $region29
  $region28: #{gnn_forward.1} parent=0 // pred_region
    _
  $region29: #{gnn_forward.1} parent=0 // pred_fallthru
    _
  // Predicated region
  $region30: #{gnn_forward.1} parent=0 // pred_check
    _
  $region31: #{gnn_forward.1} parent=0 // pred_check_branch
    %29 = sbr.rel (0) target = $region33
  $region32: #{gnn_forward.1} parent=0 // pred_region
    _
  $region33: #{gnn_forward.1} parent=0 // pred_fallthru
    _
  // Predicated region
  $region34: #{gnn_forward.1} parent=0 // pred_check
    _
  $region35: #{gnn_forward.1} parent=0 // pred_check_branch
    %31 = sbr.rel (0) target = $region37
  $region36: #{gnn_forward.1} parent=0 // pred_region
    _
  $region37: #{gnn_forward.1} parent=0 // pred_fallthru
    _
  %v33 = vld [vmem:[%s2] sm:$0xf]
  %v34 = vld [vmem:[%s2 + $0x4] sm:$0xf]
  %v35 = vld [vmem:[%s2 + $0x8] sm:$0xf]
  %v36 = vld [vmem:[%s2 + $0xc] sm:$0xf]
  %v37 = vld [vmem:[%s2 + $0x10] sm:$0xf]
  %v38 = vld [vmem:[%s2 + $0x14] sm:$0xf]
  %v39 = vld [vmem:[%s2 + $0x18] sm:$0xf]
  %v40 = vld [vmem:[%s2 + $0x1c] sm:$0xf]
  %v41 = vld [vmem:[%s2 + $0x20] sm:$0xf]
  %v42 = vld [vmem:[%s2 + $0x24] sm:$0xf]
  %v43 = vld [vmem:[%s2 + $0x28] sm:$0xf]
  %v44 = vld [vmem:[%s2 + $0x2c] sm:$0xf]
  %v45 = vld [vmem:[%s2 + $0x30] sm:$0xf]
  %v46 = vld [vmem:[%s2 + $0x34] sm:$0xf]
  %v47 = vld [vmem:[%s2 + $0x38] sm:$0xf]
  %v48 = vld [vmem:[%s2 + $0x3c] sm:$0xf]
  %v49 = vld [vmem:[%s1] sm:$0xff]
  %v50 = vld [vmem:[%s1 + $0x8] sm:$0xff]
  %v51 = vld [vmem:[%s1 + $0x10] sm:$0xff]
  %v52 = vld [vmem:[%s1 + $0x18] sm:$0xff]
  %v53 = vld [vmem:[%s1 + $0x20] sm:$0xff]
  %v54 = vld [vmem:[%s1 + $0x28] sm:$0xff]
  %v55 = vld [vmem:[%s1 + $0x30] sm:$0xff]
  %v56 = vld [vmem:[%s1 + $0x38] sm:$0xff]
  %v57 = vld [vmem:[%s1 + $0x40] sm:$0xff]
  %v58 = vld [vmem:[%s1 + $0x48] sm:$0xff]
  %v59 = vld [vmem:[%s1 + $0x50] sm:$0xff]
  %v60 = vld [vmem:[%s1 + $0x58] sm:$0xff]
  %v61 = vld [vmem:[%s1 + $0x60] sm:$0xff]
  %v62 = vld [vmem:[%s1 + $0x68] sm:$0xff]
  %v63 = vld [vmem:[%s1 + $0x70] sm:$0xff]
  %v64 = vld [vmem:[%s1 + $0x78] sm:$0xff]
  %v65 = vld [vmem:[%s0] sm:$0xf]
  %v66 = vld [vmem:[%s0 + $0x4] sm:$0xf]
  %v67 = vld [vmem:[%s0 + $0x8] sm:$0xf]
  %v68 = vld [vmem:[%s0 + $0xc] sm:$0xf]
  %v69 = vld [vmem:[%s0 + $0x10] sm:$0xf]
  %v70 = vld [vmem:[%s0 + $0x14] sm:$0xf]
  %v71 = vld [vmem:[%s0 + $0x18] sm:$0xf]
  %v72 = vld [vmem:[%s0 + $0x1c] sm:$0xf]
  %v73 = vld [vmem:[%s0 + $0x20] sm:$0xf]
  %v74 = vld [vmem:[%s0 + $0x24] sm:$0xf]
  %v75 = vld [vmem:[%s0 + $0x28] sm:$0xf]
  %v76 = vld [vmem:[%s0 + $0x2c] sm:$0xf]
  %v77 = vld [vmem:[%s0 + $0x30] sm:$0xf]
  %v78 = vld [vmem:[%s0 + $0x34] sm:$0xf]
  %v79 = vld [vmem:[%s0 + $0x38] sm:$0xf]
  %v80 = vld [vmem:[%s0 + $0x3c] sm:$0xf]
  %v97 = vunpack.c.l.b16 %v65
  %v98 = vunpack.c.l.b16 %v66
  %v99 = vunpack.c.l.b16 %v67
  %v100 = vunpack.c.l.b16 %v68
  %v101 = vunpack.c.l.b16 %v69
  %v102 = vunpack.c.l.b16 %v70
  %v103 = vunpack.c.l.b16 %v71
  %v104 = vunpack.c.l.b16 %v72
  %v105 = vunpack.c.l.b16 %v73
  %v106 = vunpack.c.l.b16 %v74
  %v107 = vunpack.c.l.b16 %v75
  %v108 = vunpack.c.l.b16 %v76
  %v109 = vunpack.c.l.b16 %v77
  %v110 = vunpack.c.l.b16 %v78
  %v111 = vunpack.c.l.b16 %v79
  %v112 = vunpack.c.l.b16 %v80
  %v113 = vpack.c.b16 %v98, %v97
  %v114 = vpack.c.b16 %v100, %v99
  %v115 = vpack.c.b16 %v102, %v101
  %v116 = vpack.c.b16 %v104, %v103
  %v117 = vpack.c.b16 %v106, %v105
  %v118 = vpack.c.b16 %v108, %v107
  %v119 = vpack.c.b16 %v110, %v109
  %v120 = vpack.c.b16 %v112, %v111
  %v145 = vunpack.c.l.b16 %v33
  %v146 = vunpack.c.l.b16 %v34
  %v147 = vunpack.c.l.b16 %v35
  %v148 = vunpack.c.l.b16 %v36
  %v149 = vunpack.c.l.b16 %v37
  %v150 = vunpack.c.l.b16 %v38
  %v151 = vunpack.c.l.b16 %v39
  %v152 = vunpack.c.l.b16 %v40
  %v153 = vunpack.c.l.b16 %v41
  %v154 = vunpack.c.l.b16 %v42
  %v155 = vunpack.c.l.b16 %v43
  %v156 = vunpack.c.l.b16 %v44
  %v157 = vunpack.c.l.b16 %v45
  %v158 = vunpack.c.l.b16 %v46
  %v159 = vunpack.c.l.b16 %v47
  %v160 = vunpack.c.l.b16 %v48
  %v161 = vpack.c.b16 %v146, %v145
  %v162 = vpack.c.b16 %v148, %v147
  %v163 = vpack.c.b16 %v150, %v149
  %v164 = vpack.c.b16 %v152, %v151
  %v165 = vpack.c.b16 %v154, %v153
  %v166 = vpack.c.b16 %v156, %v155
  %v167 = vpack.c.b16 %v158, %v157
  %v168 = vpack.c.b16 %v160, %v159
  %177 = vmatpush.bf16.msra.mxu0 %v168
  %178 = vmatpush.bf16.msra.mxu0 %v167
  %179 = vmatpush.bf16.msra.mxu0 %v166
  %180 = vmatpush.bf16.msra.mxu0 %v165
  %181 = vmatpush.bf16.msra.mxu0 %v164
  %182 = vmatpush.bf16.msra.mxu0 %v163
  %183 = vmatpush.bf16.msra.mxu0 %v162
  %184 = vmatpush.bf16.msra.mxu0 %v161
  %185 = vmatmul.bf16.gmra.mxu0 %v113
  %v186 = vpop.f32.mrf.mxu0
  %v187 = vadd.f32 0.0, %v186
  %v188 = vpop.f32.mrf.mxu0
  %v189 = vadd.f32 0.0, %v188
  %190 = vmatmul.bf16.gmra.mxu0 %v114
  %v191 = vpop.f32.mrf.mxu0
  %v192 = vadd.f32 0.0, %v191
  %v193 = vpop.f32.mrf.mxu0
  %v194 = vadd.f32 0.0, %v193
  %195 = vmatmul.bf16.gmra.mxu0 %v115
  %v196 = vpop.f32.mrf.mxu0
  %v197 = vadd.f32 0.0, %v196
  %v198 = vpop.f32.mrf.mxu0
  %v199 = vadd.f32 0.0, %v198
  %200 = vmatmul.bf16.gmra.mxu0 %v116
  %v201 = vpop.f32.mrf.mxu0
  %v202 = vadd.f32 0.0, %v201
  %v203 = vpop.f32.mrf.mxu0
  %v204 = vadd.f32 0.0, %v203
  %205 = vmatmul.bf16.gmra.mxu0 %v117
  %v206 = vpop.f32.mrf.mxu0
  %v207 = vadd.f32 0.0, %v206
  %v208 = vpop.f32.mrf.mxu0
  %v209 = vadd.f32 0.0, %v208
  %210 = vmatmul.bf16.gmra.mxu0 %v118
  %v211 = vpop.f32.mrf.mxu0
  %v212 = vadd.f32 0.0, %v211
  %v213 = vpop.f32.mrf.mxu0
  %v214 = vadd.f32 0.0, %v213
  %215 = vmatmul.bf16.gmra.mxu0 %v119
  %v216 = vpop.f32.mrf.mxu0
  %v217 = vadd.f32 0.0, %v216
  %v218 = vpop.f32.mrf.mxu0
  %v219 = vadd.f32 0.0, %v218
  %220 = vmatmul.bf16.gmra.mxu0 %v120
  %v221 = vpop.f32.mrf.mxu0
  %v222 = vadd.f32 0.0, %v221
  %v223 = vpop.f32.mrf.mxu0
  %v224 = vadd.f32 0.0, %v223
  %225 = vdwg.mxu0
  %227 = vset.pattern.permute.xlu0 0
  %228 = vperm.xlu0 %227, %v49
  %v229 = vpop.permute.xlu0 %228
  %232 = vset.pattern.permute.xlu0 0
  %233 = vperm.xlu0 %232, %v50
  %v234 = vpop.permute.xlu0 %233
  %237 = vset.pattern.permute.xlu0 0
  %238 = vperm.xlu0 %237, %v51
  %v239 = vpop.permute.xlu0 %238
  %242 = vset.pattern.permute.xlu0 0
  %243 = vperm.xlu0 %242, %v52
  %v244 = vpop.permute.xlu0 %243
  %247 = vset.pattern.permute.xlu0 0
  %248 = vperm.xlu0 %247, %v53
  %v249 = vpop.permute.xlu0 %248
  %252 = vset.pattern.permute.xlu0 0
  %253 = vperm.xlu0 %252, %v54
  %v254 = vpop.permute.xlu0 %253
  %257 = vset.pattern.permute.xlu0 0
  %258 = vperm.xlu0 %257, %v55
  %v259 = vpop.permute.xlu0 %258
  %262 = vset.pattern.permute.xlu0 0
  %263 = vperm.xlu0 %262, %v56
  %v264 = vpop.permute.xlu0 %263
  %267 = vset.pattern.permute.xlu0 0
  %268 = vperm.xlu0 %267, %v57
  %v269 = vpop.permute.xlu0 %268
  %272 = vset.pattern.permute.xlu0 0
  %273 = vperm.xlu0 %272, %v58
  %v274 = vpop.permute.xlu0 %273
  %277 = vset.pattern.permute.xlu0 0
  %278 = vperm.xlu0 %277, %v59
  %v279 = vpop.permute.xlu0 %278
  %282 = vset.pattern.permute.xlu0 0
  %283 = vperm.xlu0 %282, %v60
  %v284 = vpop.permute.xlu0 %283
  %287 = vset.pattern.permute.xlu0 0
  %288 = vperm.xlu0 %287, %v61
  %v289 = vpop.permute.xlu0 %288
  %292 = vset.pattern.permute.xlu0 0
  %293 = vperm.xlu0 %292, %v62
  %v294 = vpop.permute.xlu0 %293
  %297 = vset.pattern.permute.xlu0 0
  %298 = vperm.xlu0 %297, %v63
  %v299 = vpop.permute.xlu0 %298
  %302 = vset.pattern.permute.xlu0 0
  %303 = vperm.xlu0 %302, %v64
  %v304 = vpop.permute.xlu0 %303
  %v306 = vmul.f32 %v229, %v187
  %v307 = vmul.f32 %v234, %v189
  %v308 = vmul.f32 %v239, %v192
  %v309 = vmul.f32 %v244, %v194
  %v310 = vmul.f32 %v249, %v197
  %v311 = vmul.f32 %v254, %v199
  %v312 = vmul.f32 %v259, %v202
  %v313 = vmul.f32 %v264, %v204
  %v314 = vmul.f32 %v269, %v207
  %v315 = vmul.f32 %v274, %v209
  %v316 = vmul.f32 %v279, %v212
  %v317 = vmul.f32 %v284, %v214
  %v318 = vmul.f32 %v289, %v217
  %v319 = vmul.f32 %v294, %v219
  %v320 = vmul.f32 %v299, %v222
  %v321 = vmul.f32 %v304, %v224
  %v322 = vpack.c.bf16 %v307, %v306
  %v323 = vpack.c.bf16 %v309, %v308
  %v324 = vpack.c.bf16 %v311, %v310
  %v325 = vpack.c.bf16 %v313, %v312
  %v326 = vpack.c.bf16 %v315, %v314
  %v327 = vpack.c.bf16 %v317, %v316
  %v328 = vpack.c.bf16 %v319, %v318
  %v329 = vpack.c.bf16 %v321, %v320
  %v330 = vld [vmem:[%s3] sm:$0xf]
  %v331 = vld [vmem:[%s3 + $0x4] sm:$0xf]
  %v332 = vld [vmem:[%s4] sm:$0xf]
  %v333 = vld [vmem:[%s4 + $0x4] sm:$0xf]
  %v336 = vunpack.c.l.b16 %v332
  %v337 = vunpack.c.l.b16 %v333
  %v338 = vpack.c.b16 %v337, %v336
  %vm340 = vcmask 130048
  %v342 = vsel %vm340, %v161, 0
  %v345 = vsel %vm340, %v162, 0
  %v348 = vsel %vm340, %v163, 0
  %v351 = vsel %vm340, %v164, 0
  %v354 = vsel %vm340, %v165, 0
  %v357 = vsel %vm340, %v166, 0
  %v360 = vsel %vm340, %v167, 0
  %v363 = vsel %vm340, %v168, 0
  %365 = vmatpush.bf16.msra.mxu0 0
  %366 = vmatpush.bf16.msra.mxu0 0
  %367 = vmatpush.bf16.msra.mxu0 0
  %368 = vmatpush.bf16.msra.mxu0 0
  %369 = vmatpush.bf16.msra.mxu0 0
  %370 = vmatpush.bf16.msra.mxu0 0
  %371 = vmatpush.bf16.msra.mxu0 0
  %372 = vmatpush.bf16.msra.mxu0 %v338
  %373 = vmatmul.bf16.gmra.mxu0 %v342
  %v374 = vpop.f32.mrf.mxu0
  %v375 = vadd.f32 0.0, %v374
  %v376 = vpop.f32.mrf.mxu0
  %v377 = vadd.f32 0.0, %v376
  %378 = vmatmul.bf16.gmra.mxu0 %v345
  %v379 = vpop.f32.mrf.mxu0
  %v380 = vadd.f32 0.0, %v379
  %v381 = vpop.f32.mrf.mxu0
  %v382 = vadd.f32 0.0, %v381
  %383 = vmatmul.bf16.gmra.mxu0 %v348
  %v384 = vpop.f32.mrf.mxu0
  %v385 = vadd.f32 0.0, %v384
  %v386 = vpop.f32.mrf.mxu0
  %v387 = vadd.f32 0.0, %v386
  %388 = vmatmul.bf16.gmra.mxu0 %v351
  %v389 = vpop.f32.mrf.mxu0
  %v390 = vadd.f32 0.0, %v389
  %v391 = vpop.f32.mrf.mxu0
  %v392 = vadd.f32 0.0, %v391
  %393 = vmatmul.bf16.gmra.mxu0 %v354
  %v394 = vpop.f32.mrf.mxu0
  %v395 = vadd.f32 0.0, %v394
  %v396 = vpop.f32.mrf.mxu0
  %v397 = vadd.f32 0.0, %v396
  %398 = vmatmul.bf16.gmra.mxu0 %v357
  %v399 = vpop.f32.mrf.mxu0
  %v400 = vadd.f32 0.0, %v399
  %v401 = vpop.f32.mrf.mxu0
  %v402 = vadd.f32 0.0, %v401
  %403 = vmatmul.bf16.gmra.mxu0 %v360
  %v404 = vpop.f32.mrf.mxu0
  %v405 = vadd.f32 0.0, %v404
  %v406 = vpop.f32.mrf.mxu0
  %v407 = vadd.f32 0.0, %v406
  %408 = vmatmul.bf16.gmra.mxu0 %v363
  %v409 = vpop.f32.mrf.mxu0
  %v410 = vadd.f32 0.0, %v409
  %v411 = vpop.f32.mrf.mxu0
  %v412 = vadd.f32 0.0, %v411
  %413 = vdwg.mxu0
  %v416 = vunpack.c.l.b16 %v330
  %v417 = vunpack.c.l.b16 %v331
  %v418 = vpack.c.b16 %v417, %v416
  %v421 = vsel %vm340, %v322, 0
  %v424 = vsel %vm340, %v323, 0
  %v427 = vsel %vm340, %v324, 0
  %v430 = vsel %vm340, %v325, 0
  %v433 = vsel %vm340, %v326, 0
  %v436 = vsel %vm340, %v327, 0
  %v439 = vsel %vm340, %v328, 0
  %v442 = vsel %vm340, %v329, 0
  %444 = vmatpush.bf16.msra.mxu0 0
  %445 = vmatpush.bf16.msra.mxu0 0
  %446 = vmatpush.bf16.msra.mxu0 0
  %447 = vmatpush.bf16.msra.mxu0 0
  %448 = vmatpush.bf16.msra.mxu0 0
  %449 = vmatpush.bf16.msra.mxu0 0
  %450 = vmatpush.bf16.msra.mxu0 0
  %451 = vmatpush.bf16.msra.mxu0 %v418
  %452 = vmatmul.bf16.gmra.mxu0 %v421
  %v453 = vpop.f32.mrf.mxu0
  %v454 = vadd.f32 %v375, %v453
  %v455 = vpop.f32.mrf.mxu0
  %v456 = vadd.f32 %v377, %v455
  %457 = vmatmul.bf16.gmra.mxu0 %v424
  %v458 = vpop.f32.mrf.mxu0
  %v459 = vadd.f32 %v380, %v458
  %v460 = vpop.f32.mrf.mxu0
  %v461 = vadd.f32 %v382, %v460
  %462 = vmatmul.bf16.gmra.mxu0 %v427
  %v463 = vpop.f32.mrf.mxu0
  %v464 = vadd.f32 %v385, %v463
  %v465 = vpop.f32.mrf.mxu0
  %v466 = vadd.f32 %v387, %v465
  %467 = vmatmul.bf16.gmra.mxu0 %v430
  %v468 = vpop.f32.mrf.mxu0
  %v469 = vadd.f32 %v390, %v468
  %v470 = vpop.f32.mrf.mxu0
  %v471 = vadd.f32 %v392, %v470
  %472 = vmatmul.bf16.gmra.mxu0 %v433
  %v473 = vpop.f32.mrf.mxu0
  %v474 = vadd.f32 %v395, %v473
  %v475 = vpop.f32.mrf.mxu0
  %v476 = vadd.f32 %v397, %v475
  %477 = vmatmul.bf16.gmra.mxu0 %v436
  %v478 = vpop.f32.mrf.mxu0
  %v479 = vadd.f32 %v400, %v478
  %v480 = vpop.f32.mrf.mxu0
  %v481 = vadd.f32 %v402, %v480
  %482 = vmatmul.bf16.gmra.mxu0 %v439
  %v483 = vpop.f32.mrf.mxu0
  %v484 = vadd.f32 %v405, %v483
  %v485 = vpop.f32.mrf.mxu0
  %v486 = vadd.f32 %v407, %v485
  %487 = vmatmul.bf16.gmra.mxu0 %v442
  %v488 = vpop.f32.mrf.mxu0
  %v489 = vadd.f32 %v410, %v488
  %v490 = vpop.f32.mrf.mxu0
  %v491 = vadd.f32 %v412, %v490
  %492 = vdwg.mxu0
  %v493 = vld [vmem:[%s5] sm:$0x1]
  %v495 = vperm.slane %v493, 0
  %v497 = vadd.f32 %v454, %v495
  %v498 = vadd.f32 %v456, %v495
  %v499 = vadd.f32 %v459, %v495
  %v500 = vadd.f32 %v461, %v495
  %v501 = vadd.f32 %v464, %v495
  %v502 = vadd.f32 %v466, %v495
  %v503 = vadd.f32 %v469, %v495
  %v504 = vadd.f32 %v471, %v495
  %v505 = vadd.f32 %v474, %v495
  %v506 = vadd.f32 %v476, %v495
  %v507 = vadd.f32 %v479, %v495
  %v508 = vadd.f32 %v481, %v495
  %v509 = vadd.f32 %v484, %v495
  %v510 = vadd.f32 %v486, %v495
  %v511 = vadd.f32 %v489, %v495
  %v512 = vadd.f32 %v491, %v495
  %v513 = vmax.f32 %v497, 0.0
  %v514 = vmax.f32 %v498, 0.0
  %v515 = vmax.f32 %v499, 0.0
  %v516 = vmax.f32 %v500, 0.0
  %v517 = vmax.f32 %v501, 0.0
  %v518 = vmax.f32 %v502, 0.0
  %v519 = vmax.f32 %v503, 0.0
  %v520 = vmax.f32 %v504, 0.0
  %v521 = vmax.f32 %v505, 0.0
  %v522 = vmax.f32 %v506, 0.0
  %v523 = vmax.f32 %v507, 0.0
  %v524 = vmax.f32 %v508, 0.0
  %v525 = vmax.f32 %v509, 0.0
  %v526 = vmax.f32 %v510, 0.0
  %v527 = vmax.f32 %v511, 0.0
  %v528 = vmax.f32 %v512, 0.0
  %v529 = vpack.c.bf16 %v514, %v513
  %v530 = vpack.c.bf16 %v516, %v515
  %v531 = vpack.c.bf16 %v518, %v517
  %v532 = vpack.c.bf16 %v520, %v519
  %v533 = vpack.c.bf16 %v522, %v521
  %v534 = vpack.c.bf16 %v524, %v523
  %v535 = vpack.c.bf16 %v526, %v525
  %v536 = vpack.c.bf16 %v528, %v527
  %537 = vmatpush.bf16.msra.mxu0 %v536
  %538 = vmatpush.bf16.msra.mxu0 %v535
  %539 = vmatpush.bf16.msra.mxu0 %v534
  %540 = vmatpush.bf16.msra.mxu0 %v533
  %541 = vmatpush.bf16.msra.mxu0 %v532
  %542 = vmatpush.bf16.msra.mxu0 %v531
  %543 = vmatpush.bf16.msra.mxu0 %v530
  %544 = vmatpush.bf16.msra.mxu0 %v529
  %545 = vmatmul.bf16.gmra.mxu0 %v113
  %v546 = vpop.f32.mrf.mxu0
  %v547 = vadd.f32 0.0, %v546
  %v548 = vpop.f32.mrf.mxu0
  %v549 = vadd.f32 0.0, %v548
  %550 = vmatmul.bf16.gmra.mxu0 %v114
  %v551 = vpop.f32.mrf.mxu0
  %v552 = vadd.f32 0.0, %v551
  %v553 = vpop.f32.mrf.mxu0
  %v554 = vadd.f32 0.0, %v553
  %555 = vmatmul.bf16.gmra.mxu0 %v115
  %v556 = vpop.f32.mrf.mxu0
  %v557 = vadd.f32 0.0, %v556
  %v558 = vpop.f32.mrf.mxu0
  %v559 = vadd.f32 0.0, %v558
  %560 = vmatmul.bf16.gmra.mxu0 %v116
  %v561 = vpop.f32.mrf.mxu0
  %v562 = vadd.f32 0.0, %v561
  %v563 = vpop.f32.mrf.mxu0
  %v564 = vadd.f32 0.0, %v563
  %565 = vmatmul.bf16.gmra.mxu0 %v117
  %v566 = vpop.f32.mrf.mxu0
  %v567 = vadd.f32 0.0, %v566
  %v568 = vpop.f32.mrf.mxu0
  %v569 = vadd.f32 0.0, %v568
  %570 = vmatmul.bf16.gmra.mxu0 %v118
  %v571 = vpop.f32.mrf.mxu0
  %v572 = vadd.f32 0.0, %v571
  %v573 = vpop.f32.mrf.mxu0
  %v574 = vadd.f32 0.0, %v573
  %575 = vmatmul.bf16.gmra.mxu0 %v119
  %v576 = vpop.f32.mrf.mxu0
  %v577 = vadd.f32 0.0, %v576
  %v578 = vpop.f32.mrf.mxu0
  %v579 = vadd.f32 0.0, %v578
  %580 = vmatmul.bf16.gmra.mxu0 %v120
  %v581 = vpop.f32.mrf.mxu0
  %v582 = vadd.f32 0.0, %v581
  %v583 = vpop.f32.mrf.mxu0
  %v584 = vadd.f32 0.0, %v583
  %585 = vdwg.mxu0
  %v586 = vmul.f32 %v229, %v547
  %v587 = vmul.f32 %v234, %v549
  %v588 = vmul.f32 %v239, %v552
  %v589 = vmul.f32 %v244, %v554
  %v590 = vmul.f32 %v249, %v557
  %v591 = vmul.f32 %v254, %v559
  %v592 = vmul.f32 %v259, %v562
  %v593 = vmul.f32 %v264, %v564
  %v594 = vmul.f32 %v269, %v567
  %v595 = vmul.f32 %v274, %v569
  %v596 = vmul.f32 %v279, %v572
  %v597 = vmul.f32 %v284, %v574
  %v598 = vmul.f32 %v289, %v577
  %v599 = vmul.f32 %v294, %v579
  %v600 = vmul.f32 %v299, %v582
  %v601 = vmul.f32 %v304, %v584
  %v602 = vpack.c.bf16 %v587, %v586
  %v603 = vpack.c.bf16 %v589, %v588
  %v604 = vpack.c.bf16 %v591, %v590
  %v605 = vpack.c.bf16 %v593, %v592
  %v606 = vpack.c.bf16 %v595, %v594
  %v607 = vpack.c.bf16 %v597, %v596
  %v608 = vpack.c.bf16 %v599, %v598
  %v609 = vpack.c.bf16 %v601, %v600
  %v610 = vld [vmem:[%s6] sm:$0xf]
  %v611 = vld [vmem:[%s6 + $0x4] sm:$0xf]
  %v612 = vld [vmem:[%s6 + $0x8] sm:$0xf]
  %v613 = vld [vmem:[%s6 + $0xc] sm:$0xf]
  %v614 = vld [vmem:[%s7] sm:$0xf]
  %v615 = vld [vmem:[%s7 + $0x4] sm:$0xf]
  %v616 = vld [vmem:[%s7 + $0x8] sm:$0xf]
  %v617 = vld [vmem:[%s7 + $0xc] sm:$0xf]
  %v622 = vunpack.c.l.b16 %v614
  %v623 = vunpack.c.l.b16 %v615
  %v624 = vunpack.c.l.b16 %v616
  %v625 = vunpack.c.l.b16 %v617
  %v626 = vpack.c.b16 %v623, %v622
  %v627 = vpack.c.b16 %v625, %v624
  %vm630 = vcmask 261120
  %v632 = vsel %vm630, %v529, 0
  %v635 = vsel %vm630, %v530, 0
  %v638 = vsel %vm630, %v531, 0
  %v641 = vsel %vm630, %v532, 0
  %v644 = vsel %vm630, %v533, 0
  %v647 = vsel %vm630, %v534, 0
  %v650 = vsel %vm630, %v535, 0
  %v653 = vsel %vm630, %v536, 0
  %655 = vmatpush.bf16.msra.mxu0 0
  %656 = vmatpush.bf16.msra.mxu0 0
  %657 = vmatpush.bf16.msra.mxu0 0
  %658 = vmatpush.bf16.msra.mxu0 0
  %659 = vmatpush.bf16.msra.mxu0 0
  %660 = vmatpush.bf16.msra.mxu0 0
  %661 = vmatpush.bf16.msra.mxu0 %v627
  %662 = vmatpush.bf16.msra.mxu0 %v626
  %663 = vmatmul.bf16.gmra.mxu0 %v632
  %v664 = vpop.f32.mrf.mxu0
  %v665 = vadd.f32 0.0, %v664
  %v666 = vpop.f32.mrf.mxu0
  %v667 = vadd.f32 0.0, %v666
  %668 = vmatmul.bf16.gmra.mxu0 %v635
  %v669 = vpop.f32.mrf.mxu0
  %v670 = vadd.f32 0.0, %v669
  %v671 = vpop.f32.mrf.mxu0
  %v672 = vadd.f32 0.0, %v671
  %673 = vmatmul.bf16.gmra.mxu0 %v638
  %v674 = vpop.f32.mrf.mxu0
  %v675 = vadd.f32 0.0, %v674
  %v676 = vpop.f32.mrf.mxu0
  %v677 = vadd.f32 0.0, %v676
  %678 = vmatmul.bf16.gmra.mxu0 %v641
  %v679 = vpop.f32.mrf.mxu0
  %v680 = vadd.f32 0.0, %v679
  %v681 = vpop.f32.mrf.mxu0
  %v682 = vadd.f32 0.0, %v681
  %683 = vmatmul.bf16.gmra.mxu0 %v644
  %v684 = vpop.f32.mrf.mxu0
  %v685 = vadd.f32 0.0, %v684
  %v686 = vpop.f32.mrf.mxu0
  %v687 = vadd.f32 0.0, %v686
  %688 = vmatmul.bf16.gmra.mxu0 %v647
  %v689 = vpop.f32.mrf.mxu0
  %v690 = vadd.f32 0.0, %v689
  %v691 = vpop.f32.mrf.mxu0
  %v692 = vadd.f32 0.0, %v691
  %693 = vmatmul.bf16.gmra.mxu0 %v650
  %v694 = vpop.f32.mrf.mxu0
  %v695 = vadd.f32 0.0, %v694
  %v696 = vpop.f32.mrf.mxu0
  %v697 = vadd.f32 0.0, %v696
  %698 = vmatmul.bf16.gmra.mxu0 %v653
  %v699 = vpop.f32.mrf.mxu0
  %v700 = vadd.f32 0.0, %v699
  %v701 = vpop.f32.mrf.mxu0
  %v702 = vadd.f32 0.0, %v701
  %703 = vdwg.mxu0
  %v708 = vunpack.c.l.b16 %v610
  %v709 = vunpack.c.l.b16 %v611
  %v710 = vunpack.c.l.b16 %v612
  %v711 = vunpack.c.l.b16 %v613
  %v712 = vpack.c.b16 %v709, %v708
  %v713 = vpack.c.b16 %v711, %v710
  %v717 = vsel %vm630, %v602, 0
  %v720 = vsel %vm630, %v603, 0
  %v723 = vsel %vm630, %v604, 0
  %v726 = vsel %vm630, %v605, 0
  %v729 = vsel %vm630, %v606, 0
  %v732 = vsel %vm630, %v607, 0
  %v735 = vsel %vm630, %v608, 0
  %v738 = vsel %vm630, %v609, 0
  %740 = vmatpush.bf16.msra.mxu0 0
  %741 = vmatpush.bf16.msra.mxu0 0
  %742 = vmatpush.bf16.msra.mxu0 0
  %743 = vmatpush.bf16.msra.mxu0 0
  %744 = vmatpush.bf16.msra.mxu0 0
  %745 = vmatpush.bf16.msra.mxu0 0
  %746 = vmatpush.bf16.msra.mxu0 %v713
  %747 = vmatpush.bf16.msra.mxu0 %v712
  %748 = vmatmul.bf16.gmra.mxu0 %v717
  %v749 = vpop.f32.mrf.mxu0
  %v750 = vadd.f32 %v665, %v749
  %v751 = vpop.f32.mrf.mxu0
  %v752 = vadd.f32 %v667, %v751
  %753 = vmatmul.bf16.gmra.mxu0 %v720
  %v754 = vpop.f32.mrf.mxu0
  %v755 = vadd.f32 %v670, %v754
  %v756 = vpop.f32.mrf.mxu0
  %v757 = vadd.f32 %v672, %v756
  %758 = vmatmul.bf16.gmra.mxu0 %v723
  %v759 = vpop.f32.mrf.mxu0
  %v760 = vadd.f32 %v675, %v759
  %v761 = vpop.f32.mrf.mxu0
  %v762 = vadd.f32 %v677, %v761
  %763 = vmatmul.bf16.gmra.mxu0 %v726
  %v764 = vpop.f32.mrf.mxu0
  %v765 = vadd.f32 %v680, %v764
  %v766 = vpop.f32.mrf.mxu0
  %v767 = vadd.f32 %v682, %v766
  %768 = vmatmul.bf16.gmra.mxu0 %v729
  %v769 = vpop.f32.mrf.mxu0
  %v770 = vadd.f32 %v685, %v769
  %v771 = vpop.f32.mrf.mxu0
  %v772 = vadd.f32 %v687, %v771
  %773 = vmatmul.bf16.gmra.mxu0 %v732
  %v774 = vpop.f32.mrf.mxu0
  %v775 = vadd.f32 %v690, %v774
  %v776 = vpop.f32.mrf.mxu0
  %v777 = vadd.f32 %v692, %v776
  %778 = vmatmul.bf16.gmra.mxu0 %v735
  %v779 = vpop.f32.mrf.mxu0
  %v780 = vadd.f32 %v695, %v779
  %v781 = vpop.f32.mrf.mxu0
  %v782 = vadd.f32 %v697, %v781
  %783 = vmatmul.bf16.gmra.mxu0 %v738
  %v784 = vpop.f32.mrf.mxu0
  %v785 = vadd.f32 %v700, %v784
  %v786 = vpop.f32.mrf.mxu0
  %v787 = vadd.f32 %v702, %v786
  %788 = vdwg.mxu0
  %v789 = vld [vmem:[%s8] sm:$0x1]
  %v791 = vperm.slane %v789, 0
  %v793 = vadd.f32 %v750, %v791
  %v794 = vadd.f32 %v752, %v791
  %v795 = vadd.f32 %v755, %v791
  %v796 = vadd.f32 %v757, %v791
  %v797 = vadd.f32 %v760, %v791
  %v798 = vadd.f32 %v762, %v791
  %v799 = vadd.f32 %v765, %v791
  %v800 = vadd.f32 %v767, %v791
  %v801 = vadd.f32 %v770, %v791
  %v802 = vadd.f32 %v772, %v791
  %v803 = vadd.f32 %v775, %v791
  %v804 = vadd.f32 %v777, %v791
  %v805 = vadd.f32 %v780, %v791
  %v806 = vadd.f32 %v782, %v791
  %v807 = vadd.f32 %v785, %v791
  %v808 = vadd.f32 %v787, %v791
  %v809 = vmax.f32 %v793, 0.0
  %v810 = vmax.f32 %v794, 0.0
  %v811 = vmax.f32 %v795, 0.0
  %v812 = vmax.f32 %v796, 0.0
  %v813 = vmax.f32 %v797, 0.0
  %v814 = vmax.f32 %v798, 0.0
  %v815 = vmax.f32 %v799, 0.0
  %v816 = vmax.f32 %v800, 0.0
  %v817 = vmax.f32 %v801, 0.0
  %v818 = vmax.f32 %v802, 0.0
  %v819 = vmax.f32 %v803, 0.0
  %v820 = vmax.f32 %v804, 0.0
  %v821 = vmax.f32 %v805, 0.0
  %v822 = vmax.f32 %v806, 0.0
  %v823 = vmax.f32 %v807, 0.0
  %v824 = vmax.f32 %v808, 0.0
  %825 = vst [vmem:[%s9] sm:$0xff] %v809
  %826 = vst [vmem:[%s9 + $0x8] sm:$0xff] %v810
  %827 = vst [vmem:[%s9 + $0x10] sm:$0xff] %v811
  %828 = vst [vmem:[%s9 + $0x18] sm:$0xff] %v812
  %829 = vst [vmem:[%s9 + $0x20] sm:$0xff] %v813
  %830 = vst [vmem:[%s9 + $0x28] sm:$0xff] %v814
  %831 = vst [vmem:[%s9 + $0x30] sm:$0xff] %v815
  %832 = vst [vmem:[%s9 + $0x38] sm:$0xff] %v816
  %833 = vst [vmem:[%s9 + $0x40] sm:$0xff] %v817
  %834 = vst [vmem:[%s9 + $0x48] sm:$0xff] %v818
  %835 = vst [vmem:[%s9 + $0x50] sm:$0xff] %v819
  %836 = vst [vmem:[%s9 + $0x58] sm:$0xff] %v820
  %837 = vst [vmem:[%s9 + $0x60] sm:$0xff] %v821
  %838 = vst [vmem:[%s9 + $0x68] sm:$0xff] %v822
  %839 = vst [vmem:[%s9 + $0x70] sm:$0xff] %v823
  %840 = vst [vmem:[%s9 + $0x78] sm:$0xff] %v824
  // Predicated region
  $region38: #{gnn_forward.1} parent=0 // pred_check
    _
  $region39: #{gnn_forward.1} parent=0 // pred_check_branch
    %842 = sbr.rel (0) target = $region41
  $region40: #{gnn_forward.1} parent=0 // pred_region
    _
  $region41: #{gnn_forward.1} parent=0 // pred_fallthru
    _
  // Predicated region
  $region42: #{gnn_forward.1} parent=0 // pred_check
    _
  $region43: #{gnn_forward.1} parent=0 // pred_check_branch
    %844 = sbr.rel (0) target = $region45
  $region44: #{gnn_forward.1} parent=0 // pred_region
    _
  $region45: #{gnn_forward.1} parent=0 // pred_fallthru
    _

</llo_original>
